<compile_context>
chip_gen: v7x
topology: tpu7x:2x2x1
jax: 0.10.0
libtpu: 0.0.40
codegen_flags: <defaults>
</compile_context>

<pallas_src>
import jax
import jax.numpy as jnp
from jax.experimental import pallas as pl
from jax.experimental.pallas import tpu as pltpu


def mlp_kernel(x_ref, w1_ref, b1_ref, w2_ref, b2_ref, w3_ref, b3_ref, o_ref):
    """Fused 3-layer MLP forward for one batch tile of TILE_B rows."""
    # Cast to bf16 in-kernel (no extra HBM pass in the wrapper).
    x = x_ref[...].astype(jnp.bfloat16)                                  # (TILE_B, D)

    # fc1 + ReLU : bf16 MXU matmul, f32 accumulation, f32 elementwise.
    h1 = jnp.dot(x, w1_ref[...], preferred_element_type=jnp.float32)    # (TILE_B, 128)
    h1 = jnp.maximum(h1 + b1_ref[...], 0.0)

    # fc2 + ReLU (lane-padded to 128 output columns; pad cols are exactly 0).
    h2 = jnp.dot(h1.astype(jnp.bfloat16), w2_ref[...],
                 preferred_element_type=jnp.float32)                    # (TILE_B, 128)
    h2 = jnp.maximum(h2 + b2_ref[...], 0.0)

    # fc3: (TILE_B,128) @ (128,1) -> (TILE_B,1). Zero-padded w3 rows add 0.
    h3 = jnp.dot(h2.astype(jnp.bfloat16), w3_ref[...],
                 preferred_element_type=jnp.float32)                    # (TILE_B, 1)
    o_ref[...] = (h3 + b3_ref[...]).astype(o_ref.dtype)


def _choose_tile_b(B, max_tile_b=2048):
    """Pick a batch tile: multiple of 8, divides B if possible (avoids padding),
    <= max_tile_b, and preferring >= 2 grid steps (v7x has 2 TensorCores)."""
    cap = min(B, max_tile_b)
    cands = [t for t in range(8, cap + 1, 8) if B % t == 0]
    if not cands:
        # No clean divisor (B not a multiple of 8, or tiny B): fall back to a
        # padded tile.
        return min(max_tile_b, ((B + 7) // 8) * 8)
    two_step = [t for t in cands if B // t >= 2]
    return max(two_step) if two_step else max(cands)


def mlp_forward(x, params, *, tile_b=None):
    """Batch-tiled, pipelined forward. Returns (B, 1) float32."""
    w1, b1, w2, b2, w3, b3 = params
    B, D = x.shape
    assert w1.shape[0] == D

    if tile_b is None:
        tile_b = _choose_tile_b(B)
    assert tile_b % 8 == 0, "tile_b must be a multiple of 8"

    n_tiles = pl.cdiv(B, tile_b)
    b_pad = n_tiles * tile_b
    if b_pad != B:
        # Fallback only (extra HBM pass); the default tile_b choice avoids it.
        x = jnp.pad(x, ((0, b_pad - B), (0, 0)))

    itemsize = jnp.dtype(x.dtype).itemsize
    weight_bytes = (w1.size * 2 + w2.size * 2 + w3.size * 2
                    + b1.size * 4 + b2.size * 4 + b3.size * 4)

    # VMEM budget: double-buffered x tile + weights + f32 intermediates.
    vmem_est = (2 * tile_b * D * itemsize          # x stream (2 buffers)
                + 2 * weight_bytes                  # resident weights (2 buffers)
                + 2 * tile_b * 4                    # output tile (2 buffers)
                + 2 * tile_b * 128 * 4)             # h1/h2 f32 intermediates
    vmem_limit = int(min(max(vmem_est * 2, 32 << 20), 56 << 20))

    cost = pl.CostEstimate(
        flops=2 * b_pad * (D * 128 + 128 * 128 + 128),
        transcendentals=0,
        bytes_accessed=b_pad * D * itemsize + b_pad * 4 + weight_bytes,
    )

    out = pl.pallas_call(
        mlp_kernel,
        out_shape=jax.ShapeDtypeStruct((b_pad, 1), jnp.float32),
        grid_spec=pl.GridSpec(
            grid=(n_tiles,),
            in_specs=[
                pl.BlockSpec((tile_b, D), lambda i: (i, 0)),      # x: streamed per tile
                pl.BlockSpec((D, 128), lambda i: (0, 0)),         # w1: VMEM-resident
                pl.BlockSpec((1, 128), lambda i: (0, 0)),         # b1
                pl.BlockSpec((128, 128), lambda i: (0, 0)),       # w2 (lane-padded)
                pl.BlockSpec((1, 128), lambda i: (0, 0)),         # b2 (lane-padded)
                pl.BlockSpec((128, 1), lambda i: (0, 0)),         # w3 (row-padded)
                pl.BlockSpec((1, 1), lambda i: (0, 0)),           # b3
            ],
            out_specs=pl.BlockSpec((tile_b, 1), lambda i: (i, 0)),
        ),
        compiler_params=pltpu.CompilerParams(
            dimension_semantics=("parallel",),      # megacore split on v7x
            vmem_limit_bytes=vmem_limit,
        ),
        cost_estimate=cost,
    )(x, w1, b1, w2, b2, w3, b3)

    return out[:B]


def init_params(key, input_dim):
    """Deterministic init mimicking nn.Linear's U(-1/sqrt(in), 1/sqrt(in)).

    Weights are stored once in bf16 in (in, out) layout (transpose of torch),
    with fc2/fc3 zero-padded to 128 lanes. Biases stay f32 (zero-padded)."""
    # fc1: input_dim -> 128
    key, kw, kb = jax.random.split(key, 3)
    bound = 1.0 / jnp.sqrt(input_dim)
    w1 = jax.random.uniform(kw, (input_dim, 128), jnp.float32, -bound, bound)
    b1 = jax.random.uniform(kb, (1, 128), jnp.float32, -bound, bound)

    # fc2: 128 -> 64, padded to 128 output columns (zero tail)
    key, kw, kb = jax.random.split(key, 3)
    bound = 1.0 / jnp.sqrt(128)
    w2_real = jax.random.uniform(kw, (128, 64), jnp.float32, -bound, bound)
    b2_real = jax.random.uniform(kb, (1, 64), jnp.float32, -bound, bound)
    w2 = jnp.pad(w2_real, ((0, 0), (0, 64)))
    b2 = jnp.pad(b2_real, ((0, 0), (0, 64)))

    # fc3: 64 -> 1, padded to 128 input rows (zero tail)
    key, kw, kb = jax.random.split(key, 3)
    bound = 1.0 / jnp.sqrt(64)
    w3_real = jax.random.uniform(kw, (64, 1), jnp.float32, -bound, bound)
    b3 = jax.random.uniform(kb, (1, 1), jnp.float32, -bound, bound)
    w3 = jnp.pad(w3_real, ((0, 64), (0, 0)))

    return (w1.astype(jnp.bfloat16), b1,
            w2.astype(jnp.bfloat16), b2,
            w3.astype(jnp.bfloat16), b3)


def reference_forward(x, params):
    """Plain-JAX reference applying the same bf16 quantization as the kernel."""
    w1, b1, w2, b2, w3, b3 = params
    h = jnp.dot(x.astype(jnp.bfloat16), w1, preferred_element_type=jnp.float32)
    h = jnp.maximum(h + b1, 0.0)
    h = jnp.dot(h.astype(jnp.bfloat16), w2, preferred_element_type=jnp.float32)
    h = jnp.maximum(h + b2, 0.0)
    out = jnp.dot(h.astype(jnp.bfloat16), w3, preferred_element_type=jnp.float32) + b3
    return out  # (B, 1)


if __name__ == "__main__":
    key = jax.random.PRNGKey(0)
    key, kx = jax.random.split(key)

    # Small but large enough to exercise the batch-tiled pipeline (>= 2 steps).
    batch, input_dim = 512, 64
    x = jax.random.normal(kx, (batch, input_dim), jnp.float32)
    params = init_params(key, input_dim)

    out = jax.block_until_ready(mlp_forward(x, params))
    ref = reference_forward(x, params)

    assert out.shape == (batch, 1), out.shape
    assert jnp.allclose(out, ref, atol=1e-3, rtol=1e-3), "mismatch vs reference"

    print("KERNEL_OK")
</pallas_src>

<mosaic_0001>
module attributes {stable_mosaic.version = 11 : i64} {
  func.func @mlp_kernel(%arg0: i32, %arg1: memref<256x64xf32, #tpu.memory_space<vmem>>, %arg2: memref<64x128xbf16, #tpu.memory_space<vmem>>, %arg3: memref<1x128xf32, #tpu.memory_space<vmem>>, %arg4: memref<128x128xbf16, #tpu.memory_space<vmem>>, %arg5: memref<1x128xf32, #tpu.memory_space<vmem>>, %arg6: memref<128x1xbf16, #tpu.memory_space<vmem>>, %arg7: memref<1x1xf32, #tpu.memory_space<vmem>>, %arg8: memref<256x1xf32, #tpu.memory_space<vmem>>) attributes {dimension_semantics = [#tpu.dimension_semantics<parallel>], iteration_bounds = array<i64: 2>, scalar_prefetch = 0 : i64, scratch_operands = 0 : i64, tpu.core_type = #tpu.core_type<tc>, window_params = [{transform_indices = @transform_0, window_bounds = array<i64: 256, 64>}, {pipeline_mode = #tpu.pipeline_mode<synchronous>, transform_indices = @transform_1, window_bounds = array<i64: 64, 128>}, {pipeline_mode = #tpu.pipeline_mode<synchronous>, transform_indices = @transform_2, window_bounds = array<i64: 1, 128>}, {pipeline_mode = #tpu.pipeline_mode<synchronous>, transform_indices = @transform_3, window_bounds = array<i64: 128, 128>}, {pipeline_mode = #tpu.pipeline_mode<synchronous>, transform_indices = @transform_4, window_bounds = array<i64: 1, 128>}, {pipeline_mode = #tpu.pipeline_mode<synchronous>, transform_indices = @transform_5, window_bounds = array<i64: 128, 1>}, {pipeline_mode = #tpu.pipeline_mode<synchronous>, transform_indices = @transform_6, window_bounds = array<i64: 1, 1>}, {transform_indices = @transform_7, window_bounds = array<i64: 256, 1>}]} {
    %c0 = arith.constant 0 : index
    %c0_0 = arith.constant 0 : index
    %0 = vector.load %arg1[%c0, %c0_0] : memref<256x64xf32, #tpu.memory_space<vmem>>, vector<256x64xf32>
    %1 = arith.truncf %0 : vector<256x64xf32> to vector<256x64xbf16>
    %c0_1 = arith.constant 0 : index
    %c0_2 = arith.constant 0 : index
    %2 = vector.load %arg2[%c0_1, %c0_2] : memref<64x128xbf16, #tpu.memory_space<vmem>>, vector<64x128xbf16>
    %cst = arith.constant dense<0.000000e+00> : vector<256x128xf32>
    %3 = tpu.matmul %1, %2, %cst {dimension_numbers = #tpu.dot_dimension_numbers<[1], [0], [0], [1], [0, 0, 1, 1], [], []>} : vector<256x64xbf16>, vector<64x128xbf16>, vector<256x128xf32> -> vector<256x128xf32>
    %c0_3 = arith.constant 0 : index
    %c0_4 = arith.constant 0 : index
    %4 = vector.load %arg3[%c0_3, %c0_4] : memref<1x128xf32, #tpu.memory_space<vmem>>, vector<1x128xf32>
    %5 = vector.broadcast %4 : vector<1x128xf32> to vector<256x128xf32>
    %6 = arith.addf %3, %5 : vector<256x128xf32>
    %cst_5 = arith.constant 0.000000e+00 : f32
    %7 = vector.broadcast %cst_5 : f32 to vector<256x128xf32>
    %8 = arith.maximumf %6, %7 : vector<256x128xf32>
    %9 = arith.truncf %8 : vector<256x128xf32> to vector<256x128xbf16>
    %c0_6 = arith.constant 0 : index
    %c0_7 = arith.constant 0 : index
    %10 = vector.load %arg4[%c0_6, %c0_7] : memref<128x128xbf16, #tpu.memory_space<vmem>>, vector<128x128xbf16>
    %cst_8 = arith.constant dense<0.000000e+00> : vector<256x128xf32>
    %11 = tpu.matmul %9, %10, %cst_8 {dimension_numbers = #tpu.dot_dimension_numbers<[1], [0], [0], [1], [0, 0, 1, 1], [], []>} : vector<256x128xbf16>, vector<128x128xbf16>, vector<256x128xf32> -> vector<256x128xf32>
    %c0_9 = arith.constant 0 : index
    %c0_10 = arith.constant 0 : index
    %12 = vector.load %arg5[%c0_9, %c0_10] : memref<1x128xf32, #tpu.memory_space<vmem>>, vector<1x128xf32>
    %13 = vector.broadcast %12 : vector<1x128xf32> to vector<256x128xf32>
    %14 = arith.addf %11, %13 : vector<256x128xf32>
    %cst_11 = arith.constant 0.000000e+00 : f32
    %15 = vector.broadcast %cst_11 : f32 to vector<256x128xf32>
    %16 = arith.maximumf %14, %15 : vector<256x128xf32>
    %17 = arith.truncf %16 : vector<256x128xf32> to vector<256x128xbf16>
    %c0_12 = arith.constant 0 : index
    %c0_13 = arith.constant 0 : index
    %18 = vector.load %arg6[%c0_12, %c0_13] : memref<128x1xbf16, #tpu.memory_space<vmem>>, vector<128x1xbf16>
    %cst_14 = arith.constant dense<0.000000e+00> : vector<256x1xf32>
    %19 = tpu.matmul %17, %18, %cst_14 {dimension_numbers = #tpu.dot_dimension_numbers<[1], [0], [0], [1], [0, 0, 1, 1], [], []>} : vector<256x128xbf16>, vector<128x1xbf16>, vector<256x1xf32> -> vector<256x1xf32>
    %c0_15 = arith.constant 0 : index
    %c0_16 = arith.constant 0 : index
    %20 = vector.load %arg7[%c0_15, %c0_16] : memref<1x1xf32, #tpu.memory_space<vmem>>, vector<1x1xf32>
    %21 = vector.broadcast %20 : vector<1x1xf32> to vector<256x1xf32>
    %22 = arith.addf %19, %21 : vector<256x1xf32>
    %c0_17 = arith.constant 0 : index
    %c0_18 = arith.constant 0 : index
    %23 = vector.load %arg8[%c0_17, %c0_18] : memref<256x1xf32, #tpu.memory_space<vmem>>, vector<256x1xf32>
    tpu.vector_store %arg8[%c0_17, %c0_18], %22 {strides = array<i32>} : memref<256x1xf32, #tpu.memory_space<vmem>>, vector<256x1xf32>,
    return
  }
  func.func @transform_0(%arg0: i32) -> (i32, i32) {
    %c0_i32 = arith.constant 0 : i32
    %c0_i32_0 = arith.constant 0 : i32
    return %arg0, %c0_i32 : i32, i32
  }
  func.func @transform_1(%arg0: i32) -> (i32, i32) {
    %c0_i32 = arith.constant 0 : i32
    %c0_i32_0 = arith.constant 0 : i32
    %c0_i32_1 = arith.constant 0 : i32
    return %c0_i32, %c0_i32_0 : i32, i32
  }
  func.func @transform_2(%arg0: i32) -> (i32, i32) {
    %c0_i32 = arith.constant 0 : i32
    %c0_i32_0 = arith.constant 0 : i32
    %c0_i32_1 = arith.constant 0 : i32
    return %c0_i32, %c0_i32_0 : i32, i32
  }
  func.func @transform_3(%arg0: i32) -> (i32, i32) {
    %c0_i32 = arith.constant 0 : i32
    %c0_i32_0 = arith.constant 0 : i32
    %c0_i32_1 = arith.constant 0 : i32
    return %c0_i32, %c0_i32_0 : i32, i32
  }
  func.func @transform_4(%arg0: i32) -> (i32, i32) {
    %c0_i32 = arith.constant 0 : i32
    %c0_i32_0 = arith.constant 0 : i32
    %c0_i32_1 = arith.constant 0 : i32
    return %c0_i32, %c0_i32_0 : i32, i32
  }
  func.func @transform_5(%arg0: i32) -> (i32, i32) {
    %c0_i32 = arith.constant 0 : i32
    %c0_i32_0 = arith.constant 0 : i32
    %c0_i32_1 = arith.constant 0 : i32
    return %c0_i32, %c0_i32_0 : i32, i32
  }
  func.func @transform_6(%arg0: i32) -> (i32, i32) {
    %c0_i32 = arith.constant 0 : i32
    %c0_i32_0 = arith.constant 0 : i32
    %c0_i32_1 = arith.constant 0 : i32
    return %c0_i32, %c0_i32_0 : i32, i32
  }
  func.func @transform_7(%arg0: i32) -> (i32, i32) {
    %c0_i32 = arith.constant 0 : i32
    %c0_i32_0 = arith.constant 0 : i32
    return %arg0, %c0_i32 : i32, i32
  }
}

</mosaic_0001>

<llo_original>
// kernel: tpu_custom_call.1
$region0: #{tpu_custom_call.1}
  #allocation0 [shape = 'u32[]', space=smem, size = 0x4, offset = 0x4, fixed_abs, tag = 'smem constant byte address 0x4 - core index']
  #allocation1 [shape = 'u32[144,128]{1,0:T(1,128)}', space=vmem, size = 0x12000, scoped, tag = 'internal scratch']
  #allocation2 [shape = 'f32[1,1]{1,0:T(1,128)S(1)}', space=vmem, size = 0x200, scoped, tag = 'scoped memory for tpu_custom_call.1']
  %s0 = inlined_call_operand.vmem [shape: f32[512,64], index: 0, kind: input, shape index: {}]
  %s1 = inlined_call_operand.vmem [shape: bf16[64,128], index: 1, kind: input, shape index: {}]
  %s2 = inlined_call_operand.vmem [shape: f32[1,128], index: 2, kind: input, shape index: {}]
  %s3 = inlined_call_operand.vmem [shape: bf16[128,128], index: 3, kind: input, shape index: {}]
  %s4 = inlined_call_operand.vmem [shape: f32[1,128], index: 4, kind: input, shape index: {}]
  %s5 = inlined_call_operand.vmem [shape: bf16[128,1], index: 5, kind: input, shape index: {}]
  %s6 = inlined_call_operand.<no memory space> [shape: f32[1,1], index: 6, kind: input, shape index: {}]
  %s7 = inlined_call_operand.vmem [shape: f32[512,1], index: 7, kind: output, shape index: {}]
  %s8 = sld [smem:[#allocation0]]
  $region61: #{tpu_custom_call.1} parent=0
    _
  %s10 = ssub.s32 1, %s8
  %s11 = scalar_select 0, %s10, %s8
  %v12 = vstv %s6
  %13 = vst [vmem:[#allocation2] sm:$0x1] %v12
  loop: start=0, step=1, limit=4
  $region2: #{tpu_custom_call.1} parent=0 // loop_pre_header
    _
  $region3: #{tpu_custom_call.1} parent=0 // loop_header
    %s15 = sphi 0, %s19
    %p16 = scmp.ge.s32.totalorder %s15, 4
    %s25 = sphi 0, %s27
    %s28 = sphi 0, %s25
    %s29 = sphi 0, %s28
    %s45 = sphi 0, %s29
    %s49 = sphi 0, %s49
    %s51 = sphi 0, %s49
    %s52 = sphi 0, %s51
    %s66 = sphi 0, %s52
    %s70 = sphi 0, %s70
    %s72 = sphi 0, %s70
    %s73 = sphi 0, %s72
    %s87 = sphi 0, %s73
    %s91 = sphi 0, %s91
    %s93 = sphi 0, %s91
    %s94 = sphi 0, %s93
    %s108 = sphi 0, %s94
    %s112 = sphi 0, %s112
    %s114 = sphi 0, %s112
    %s115 = sphi 0, %s114
    %s129 = sphi 0, %s115
    %s133 = sphi 0, %s133
    %s135 = sphi 0, %s133
    %s136 = sphi 0, %s135
    %s150 = sphi 0, %s136
    %s154 = sphi 0, %s154
    %s156 = sphi 0, %s154
    %s157 = sphi 0, %s156
    %s171 = sphi 0, %s157
    %s177 = sphi 0, %s179
    %s180 = sphi 0, %s177
    %s181 = sphi 0, %s180
    %s197 = sphi 0, %s181
  $region4: #{tpu_custom_call.1} parent=0 // loop_header_branch
    %18 = sbr.rel (%p16) target = $region8
  $region5: #{tpu_custom_call.1} parent=0 // loop_body
    %s20 = ssub.s32 %s15, 1
    %s21 = ssub.s32 %s15, 2
    %s22 = sadd.s32 %s15, 1
    %s23 = ssub.s32 %s15, %s22
    %p24 = scmp.eq.s32.totalorder %s23, 0
    %s26 = sadd.s32 %s25, 1
    %s27 = scalar_select %p24, %s25, %s26
    %p30 = pneg %p24
    %p31 = scmp.eq.s32.totalorder %s15, 1
    %p32 = por %p30, %p31
    %p33 = scmp.ne.s32.totalorder %s25, %s28
    %p34 = scmp.eq.s32.totalorder %s15, 0
    %p35 = por %p33, %p34
    %p36 = scmp.ne.s32.totalorder %s25, %s28
    %p37 = scmp.eq.s32.totalorder %s20, 1
    %p38 = por %p36, %p37
    %p39 = scmp.ne.s32.totalorder %s28, %s29
    %p40 = scmp.eq.s32.totalorder %s20, 0
    %p41 = por %p39, %p40
    %p42 = scmp.ne.s32.totalorder %s28, %s29
    %p43 = scmp.eq.s32.totalorder %s21, 1
    %p44 = por %p42, %p43
    %p46 = scmp.ne.s32.totalorder %s29, %s45
    %p47 = scmp.eq.s32.totalorder %s21, 0
    %p48 = por %p46, %p47
    %s50 = sadd.s32 %s49, 1
    %p53 = scmp.eq.s32.totalorder %s15, 1
    %p54 = scmp.ne.s32.totalorder %s49, %s51
    %p55 = scmp.eq.s32.totalorder %s15, 0
    %p56 = por %p54, %p55
    %p57 = scmp.ne.s32.totalorder %s49, %s51
    %p58 = scmp.eq.s32.totalorder %s20, 1
    %p59 = por %p57, %p58
    %p60 = scmp.ne.s32.totalorder %s51, %s52
    %p61 = scmp.eq.s32.totalorder %s20, 0
    %p62 = por %p60, %p61
    %p63 = scmp.ne.s32.totalorder %s51, %s52
    %p64 = scmp.eq.s32.totalorder %s21, 1
    %p65 = por %p63, %p64
    %p67 = scmp.ne.s32.totalorder %s52, %s66
    %p68 = scmp.eq.s32.totalorder %s21, 0
    %p69 = por %p67, %p68
    %s71 = sadd.s32 %s70, 1
    %p74 = scmp.eq.s32.totalorder %s15, 1
    %p75 = scmp.ne.s32.totalorder %s70, %s72
    %p76 = scmp.eq.s32.totalorder %s15, 0
    %p77 = por %p75, %p76
    %p78 = scmp.ne.s32.totalorder %s70, %s72
    %p79 = scmp.eq.s32.totalorder %s20, 1
    %p80 = por %p78, %p79
    %p81 = scmp.ne.s32.totalorder %s72, %s73
    %p82 = scmp.eq.s32.totalorder %s20, 0
    %p83 = por %p81, %p82
    %p84 = scmp.ne.s32.totalorder %s72, %s73
    %p85 = scmp.eq.s32.totalorder %s21, 1
    %p86 = por %p84, %p85
    %p88 = scmp.ne.s32.totalorder %s73, %s87
    %p89 = scmp.eq.s32.totalorder %s21, 0
    %p90 = por %p88, %p89
    %s92 = sadd.s32 %s91, 1
    %p95 = scmp.eq.s32.totalorder %s15, 1
    %p96 = scmp.ne.s32.totalorder %s91, %s93
    %p97 = scmp.eq.s32.totalorder %s15, 0
    %p98 = por %p96, %p97
    %p99 = scmp.ne.s32.totalorder %s91, %s93
    %p100 = scmp.eq.s32.totalorder %s20, 1
    %p101 = por %p99, %p100
    %p102 = scmp.ne.s32.totalorder %s93, %s94
    %p103 = scmp.eq.s32.totalorder %s20, 0
    %p104 = por %p102, %p103
    %p105 = scmp.ne.s32.totalorder %s93, %s94
    %p106 = scmp.eq.s32.totalorder %s21, 1
    %p107 = por %p105, %p106
    %p109 = scmp.ne.s32.totalorder %s94, %s108
    %p110 = scmp.eq.s32.totalorder %s21, 0
    %p111 = por %p109, %p110
    %s113 = sadd.s32 %s112, 1
    %p116 = scmp.eq.s32.totalorder %s15, 1
    %p117 = scmp.ne.s32.totalorder %s112, %s114
    %p118 = scmp.eq.s32.totalorder %s15, 0
    %p119 = por %p117, %p118
    %p120 = scmp.ne.s32.totalorder %s112, %s114
    %p121 = scmp.eq.s32.totalorder %s20, 1
    %p122 = por %p120, %p121
    %p123 = scmp.ne.s32.totalorder %s114, %s115
    %p124 = scmp.eq.s32.totalorder %s20, 0
    %p125 = por %p123, %p124
    %p126 = scmp.ne.s32.totalorder %s114, %s115
    %p127 = scmp.eq.s32.totalorder %s21, 1
    %p128 = por %p126, %p127
    %p130 = scmp.ne.s32.totalorder %s115, %s129
    %p131 = scmp.eq.s32.totalorder %s21, 0
    %p132 = por %p130, %p131
    %s134 = sadd.s32 %s133, 1
    %p137 = scmp.eq.s32.totalorder %s15, 1
    %p138 = scmp.ne.s32.totalorder %s133, %s135
    %p139 = scmp.eq.s32.totalorder %s15, 0
    %p140 = por %p138, %p139
    %p141 = scmp.ne.s32.totalorder %s133, %s135
    %p142 = scmp.eq.s32.totalorder %s20, 1
    %p143 = por %p141, %p142
    %p144 = scmp.ne.s32.totalorder %s135, %s136
    %p145 = scmp.eq.s32.totalorder %s20, 0
    %p146 = por %p144, %p145
    %p147 = scmp.ne.s32.totalorder %s135, %s136
    %p148 = scmp.eq.s32.totalorder %s21, 1
    %p149 = por %p147, %p148
    %p151 = scmp.ne.s32.totalorder %s136, %s150
    %p152 = scmp.eq.s32.totalorder %s21, 0
    %p153 = por %p151, %p152
    %s155 = sadd.s32 %s154, 1
    %p158 = scmp.eq.s32.totalorder %s15, 1
    %p159 = scmp.ne.s32.totalorder %s154, %s156
    %p160 = scmp.eq.s32.totalorder %s15, 0
    %p161 = por %p159, %p160
    %p162 = scmp.ne.s32.totalorder %s154, %s156
    %p163 = scmp.eq.s32.totalorder %s20, 1
    %p164 = por %p162, %p163
    %p165 = scmp.ne.s32.totalorder %s156, %s157
    %p166 = scmp.eq.s32.totalorder %s20, 0
    %p167 = por %p165, %p166
    %p168 = scmp.ne.s32.totalorder %s156, %s157
    %p169 = scmp.eq.s32.totalorder %s21, 1
    %p170 = por %p168, %p169
    %p172 = scmp.ne.s32.totalorder %s157, %s171
    %p173 = scmp.eq.s32.totalorder %s21, 0
    %p174 = por %p172, %p173
    %s175 = ssub.s32 %s15, %s22
    %p176 = scmp.eq.s32.totalorder %s175, 0
    %s178 = sadd.s32 %s177, 1
    %s179 = scalar_select %p176, %s177, %s178
    %p182 = pneg %p176
    %p183 = scmp.eq.s32.totalorder %s15, 1
    %p184 = por %p182, %p183
    %p185 = scmp.ne.s32.totalorder %s177, %s180
    %p186 = scmp.eq.s32.totalorder %s15, 0
    %p187 = por %p185, %p186
    %p188 = scmp.ne.s32.totalorder %s177, %s180
    %p189 = scmp.eq.s32.totalorder %s20, 1
    %p190 = por %p188, %p189
    %p191 = scmp.ne.s32.totalorder %s180, %s181
    %p192 = scmp.eq.s32.totalorder %s20, 0
    %p193 = por %p191, %p192
    %p194 = scmp.ne.s32.totalorder %s180, %s181
    %p195 = scmp.eq.s32.totalorder %s21, 1
    %p196 = por %p194, %p195
    %p198 = scmp.ne.s32.totalorder %s181, %s197
    %p199 = scmp.eq.s32.totalorder %s21, 0
    %p200 = por %p198, %p199
    %p201 = scmp.le.s32.totalorder 1, %s15
    %p202 = scmp.lt.s32.totalorder %s15, 3
    %p203 = pnand %p201, %p202
    %p204 = pneg %p203
    // Predicated region
    $region9: #{tpu_custom_call.1} parent=5 // pred_check
      _
    $region10: #{tpu_custom_call.1} parent=5 // pred_check_branch
      %206 = sbr.rel (%p203) target = $region12
    $region11: #{tpu_custom_call.1} parent=5 // pred_region
      %s207 = ssub.s32 %s15, 1
      // Predicated region
      $region13: #{tpu_custom_call.1} parent=11 // pred_check
        %p208 = pneg %p62
      $region14: #{tpu_custom_call.1} parent=11 // pred_check_branch
        %210 = sbr.rel (%p208) target = $region16
      $region15: #{tpu_custom_call.1} parent=11 // pred_region
        _
      $region16: #{tpu_custom_call.1} parent=11 // pred_fallthru
        _
      // Predicated region
      $region17: #{tpu_custom_call.1} parent=11 // pred_check
        %p211 = pneg %p83
      $region18: #{tpu_custom_call.1} parent=11 // pred_check_branch
        %213 = sbr.rel (%p211) target = $region20
      $region19: #{tpu_custom_call.1} parent=11 // pred_region
        _
      $region20: #{tpu_custom_call.1} parent=11 // pred_fallthru
        _
      // Predicated region
      $region21: #{tpu_custom_call.1} parent=11 // pred_check
        %p214 = pneg %p104
      $region22: #{tpu_custom_call.1} parent=11 // pred_check_branch
        %216 = sbr.rel (%p214) target = $region24
      $region23: #{tpu_custom_call.1} parent=11 // pred_region
        _
      $region24: #{tpu_custom_call.1} parent=11 // pred_fallthru
        _
      // Predicated region
      $region25: #{tpu_custom_call.1} parent=11 // pred_check
        %p217 = pneg %p125
      $region26: #{tpu_custom_call.1} parent=11 // pred_check_branch
        %219 = sbr.rel (%p217) target = $region28
      $region27: #{tpu_custom_call.1} parent=11 // pred_region
        _
      $region28: #{tpu_custom_call.1} parent=11 // pred_fallthru
        _
      // Predicated region
      $region29: #{tpu_custom_call.1} parent=11 // pred_check
        %p220 = pneg %p146
      $region30: #{tpu_custom_call.1} parent=11 // pred_check_branch
        %222 = sbr.rel (%p220) target = $region32
      $region31: #{tpu_custom_call.1} parent=11 // pred_region
        _
      $region32: #{tpu_custom_call.1} parent=11 // pred_fallthru
        _
      // Predicated region
      $region33: #{tpu_custom_call.1} parent=11 // pred_check
        %p223 = pneg %p167
      $region34: #{tpu_custom_call.1} parent=11 // pred_check_branch
        %225 = sbr.rel (%p223) target = $region36
      $region35: #{tpu_custom_call.1} parent=11 // pred_region
        _
      $region36: #{tpu_custom_call.1} parent=11 // pred_fallthru
        _
    $region12: #{tpu_custom_call.1} parent=5 // pred_fallthru
      _
    %p226 = scmp.lt.s32.totalorder %s15, 2
    // Predicated region
    $region37: #{tpu_custom_call.1} parent=5 // pred_check
      %p227 = pneg %p226
    $region38: #{tpu_custom_call.1} parent=5 // pred_check_branch
      %229 = sbr.rel (%p227) target = $region40
    $region39: #{tpu_custom_call.1} parent=5 // pred_region
      // Predicated region
      $region41: #{tpu_custom_call.1} parent=39 // pred_check
        %p230 = pneg %p35
      $region42: #{tpu_custom_call.1} parent=39 // pred_check_branch
        %232 = sbr.rel (%p230) target = $region44
      $region43: #{tpu_custom_call.1} parent=39 // pred_region
        %s233 = smul.u32 32, %s15
        %p234 = scmp.lt.s32.totalorder %s233, 63
        %s235 = scalar_select %p234, %s233, 63
        %s236 = smul.addr %s235, 8
        %s237 = scalar_lea.vmem %s0, %s236
        %s238 = smul.u32 32, %s15
      $region44: #{tpu_custom_call.1} parent=39 // pred_fallthru
        _
    $region40: #{tpu_custom_call.1} parent=5 // pred_fallthru
      _
    %p239 = scmp.le.s32.totalorder 1, %s15
    %p240 = scmp.lt.s32.totalorder %s15, 3
    %p241 = pnand %p239, %p240
    %p242 = pneg %p241
    // Predicated region
    $region45: #{tpu_custom_call.1} parent=5 // pred_check
      _
    $region46: #{tpu_custom_call.1} parent=5 // pred_check_branch
      %244 = sbr.rel (%p241) target = $region48
    $region47: #{tpu_custom_call.1} parent=5 // pred_region
      %s245 = ssub.s32 %s15, 1
      %s246 = smul.u32 32, %s20
      %p247 = scmp.lt.s32.totalorder %s246, 63
      %s248 = scalar_select %p247, %s246, 63
      %s249 = smul.addr %s248, 8
      %s250 = scalar_lea.vmem %s0, %s249
      %p251 = pneg %p41
      %p252 = pneg %p38
      %p253 = pneg %p62
      %p254 = pneg %p59
      %p255 = pneg %p83
      %p256 = pneg %p80
      %p257 = pneg %p104
      %p258 = pneg %p101
      %p259 = pneg %p125
      %p260 = pneg %p122
      %p261 = pneg %p146
      %p262 = pneg %p143
      %p263 = pneg %p167
      %p264 = pneg %p164
      %p265 = pneg %p193
      %p266 = pneg %p190
      %s267 = smul.u32 32, %s20
      %p268 = scmp.lt.s32.totalorder %s267, 63
      %s269 = scalar_select %p268, %s267, 63
      %s270 = smul.addr %s269, 8
      %s271 = scalar_lea.vmem %s7, %s270
      %s272 = smul.u32 32, %s20
      %p273 = scmp.lt.s32.totalorder %s272, 63
      %s274 = scalar_select %p273, %s272, 63
      %s275 = smul.addr %s274, 8
      %s276 = scalar_lea.vmem %s0, %s275
      %s277 = smul.u32 32, %s20
      %s278 = smul.u32 32, %s20
      %p279 = scmp.lt.s32.totalorder %s278, 63
      %s280 = scalar_select %p279, %s278, 63
      %s281 = smul.addr %s280, 8
      %s282 = scalar_lea.vmem %s7, %s281
      %s283 = smul.u32 32, %s20
      %v285 = vld [vmem:[%s276] sm:$0xff]
      %v286 = vld [vmem:[%s276 + $0x8] sm:$0xff]
      %v287 = vld [vmem:[%s276 + $0x10] sm:$0xff]
      %v288 = vld [vmem:[%s276 + $0x18] sm:$0xff]
      %v289 = vld [vmem:[%s276 + $0x20] sm:$0xff]
      %v290 = vld [vmem:[%s276 + $0x28] sm:$0xff]
      %v291 = vld [vmem:[%s276 + $0x30] sm:$0xff]
      %v292 = vld [vmem:[%s276 + $0x38] sm:$0xff]
      %v293 = vld [vmem:[%s276 + $0x40] sm:$0xff]
      %v294 = vld [vmem:[%s276 + $0x48] sm:$0xff]
      %v295 = vld [vmem:[%s276 + $0x50] sm:$0xff]
      %v296 = vld [vmem:[%s276 + $0x58] sm:$0xff]
      %v297 = vld [vmem:[%s276 + $0x60] sm:$0xff]
      %v298 = vld [vmem:[%s276 + $0x68] sm:$0xff]
      %v299 = vld [vmem:[%s276 + $0x70] sm:$0xff]
      %v300 = vld [vmem:[%s276 + $0x78] sm:$0xff]
      %v301 = vld [vmem:[%s276 + $0x80] sm:$0xff]
      %v302 = vld [vmem:[%s276 + $0x88] sm:$0xff]
      %v303 = vld [vmem:[%s276 + $0x90] sm:$0xff]
      %v304 = vld [vmem:[%s276 + $0x98] sm:$0xff]
      %v305 = vld [vmem:[%s276 + $0xa0] sm:$0xff]
      %v306 = vld [vmem:[%s276 + $0xa8] sm:$0xff]
      %v307 = vld [vmem:[%s276 + $0xb0] sm:$0xff]
      %v308 = vld [vmem:[%s276 + $0xb8] sm:$0xff]
      %v309 = vld [vmem:[%s276 + $0xc0] sm:$0xff]
      %v310 = vld [vmem:[%s276 + $0xc8] sm:$0xff]
      %v311 = vld [vmem:[%s276 + $0xd0] sm:$0xff]
      %v312 = vld [vmem:[%s276 + $0xd8] sm:$0xff]
      %v313 = vld [vmem:[%s276 + $0xe0] sm:$0xff]
      %v314 = vld [vmem:[%s276 + $0xe8] sm:$0xff]
      %v315 = vld [vmem:[%s276 + $0xf0] sm:$0xff]
      %v316 = vld [vmem:[%s276 + $0xf8] sm:$0xff]
      %v317 = vpack.c.bf16 %v286, %v285
      %v318 = vpack.c.bf16 %v288, %v287
      %v319 = vpack.c.bf16 %v290, %v289
      %v320 = vpack.c.bf16 %v292, %v291
      %v321 = vpack.c.bf16 %v294, %v293
      %v322 = vpack.c.bf16 %v296, %v295
      %v323 = vpack.c.bf16 %v298, %v297
      %v324 = vpack.c.bf16 %v300, %v299
      %v325 = vpack.c.bf16 %v302, %v301
      %v326 = vpack.c.bf16 %v304, %v303
      %v327 = vpack.c.bf16 %v306, %v305
      %v328 = vpack.c.bf16 %v308, %v307
      %v329 = vpack.c.bf16 %v310, %v309
      %v330 = vpack.c.bf16 %v312, %v311
      %v331 = vpack.c.bf16 %v314, %v313
      %v332 = vpack.c.bf16 %v316, %v315
      %v333 = vld [vmem:[%s1] sm:$0xf]
      %v334 = vld [vmem:[%s1 + $0x4] sm:$0xf]
      %v335 = vld [vmem:[%s1 + $0x8] sm:$0xf]
      %v336 = vld [vmem:[%s1 + $0xc] sm:$0xf]
      %v337 = vld [vmem:[%s1 + $0x10] sm:$0xf]
      %v338 = vld [vmem:[%s1 + $0x14] sm:$0xf]
      %v339 = vld [vmem:[%s1 + $0x18] sm:$0xf]
      %v340 = vld [vmem:[%s1 + $0x1c] sm:$0xf]
      %v341 = vld [vmem:[%s2] sm:$0x1]
      %v343 = vlaneseq
      %v344 = vshrl.u32 %v343, 7
      %v345 = vsub.s32 0, %v344
      %v346 = vrot.slane %v341, %v345
      %v356 = vunpack.c.l.b16 %v333
      %v357 = vunpack.c.l.b16 %v334
      %v358 = vunpack.c.l.b16 %v335
      %v359 = vunpack.c.l.b16 %v336
      %v360 = vunpack.c.l.b16 %v337
      %v361 = vunpack.c.l.b16 %v338
      %v362 = vunpack.c.l.b16 %v339
      %v363 = vunpack.c.l.b16 %v340
      %v364 = vpack.c.b16 %v357, %v356
      %v365 = vpack.c.b16 %v359, %v358
      %v366 = vpack.c.b16 %v361, %v360
      %v367 = vpack.c.b16 %v363, %v362
      %vm372 = vcmask 523264
      %v374 = vsel %vm372, %v317, 0
      %v377 = vsel %vm372, %v318, 0
      %v380 = vsel %vm372, %v319, 0
      %v383 = vsel %vm372, %v320, 0
      %v386 = vsel %vm372, %v321, 0
      %v389 = vsel %vm372, %v322, 0
      %v392 = vsel %vm372, %v323, 0
      %v395 = vsel %vm372, %v324, 0
      %v398 = vsel %vm372, %v325, 0
      %v401 = vsel %vm372, %v326, 0
      %v404 = vsel %vm372, %v327, 0
      %v407 = vsel %vm372, %v328, 0
      %v410 = vsel %vm372, %v329, 0
      %v413 = vsel %vm372, %v330, 0
      %v416 = vsel %vm372, %v331, 0
      %v419 = vsel %vm372, %v332, 0
      %421 = vmatprep.subr.bf16.mxu0 0
      %422 = vmatpush1.bf16.msra.mxu0 %v364
      %423 = vmatprep.subr.bf16.mxu0 0
      %424 = vmatpush1.bf16.msra.mxu0 %v365
      %425 = vmatprep.subr.bf16.mxu0 0
      %426 = vmatpush1.bf16.msra.mxu0 %v366
      %427 = vmatprep.subr.bf16.mxu0 0
      %428 = vmatpush1.bf16.msra.mxu0 %v367
      %429 = vmatprep.subr.bf16.mxu0 0
      %430 = vmatpush1.bf16.msra.mxu0 0
      %431 = vmatprep.subr.bf16.mxu0 0
      %432 = vmatpush1.bf16.msra.mxu0 0
      %433 = vmatprep.subr.bf16.mxu0 0
      %434 = vmatpush1.bf16.msra.mxu0 0
      %435 = vmatprep.subr.bf16.mxu0 0
      %436 = vmatpush1.bf16.msra.mxu0 0
      %437 = vmatprep.subr.bf16.mxu0 0
      %438 = vmatpush1.bf16.msra.mxu0 0
      %439 = vmatprep.subr.bf16.mxu0 0
      %440 = vmatpush1.bf16.msra.mxu0 0
      %441 = vmatprep.subr.bf16.mxu0 0
      %442 = vmatpush1.bf16.msra.mxu0 0
      %443 = vmatprep.subr.bf16.mxu0 0
      %444 = vmatpush1.bf16.msra.mxu0 0
      %445 = vmatprep.subr.bf16.mxu0 0
      %446 = vmatpush1.bf16.msra.mxu0 0
      %447 = vmatprep.subr.bf16.mxu0 0
      %448 = vmatpush1.bf16.msra.mxu0 0
      %449 = vmatprep.subr.bf16.mxu0 0
      %450 = vmatpush1.bf16.msra.mxu0 0
      %451 = vmatprep.subr.bf16.mxu0 0
      %452 = vmatpush1.bf16.msra.mxu0 0
      %453 = vmatprep.mubr.bf16.mxu0 0
      %454 = vmatmul.mubr.bf16.gmra.mrb[0].mxu0 %v374
      %v455 = vpop.f32.mrb[0].mxu0
      %v456 = vadd.f32 %v346, %v455
      %v457 = vpop.f32.mrb[0].mxu0
      %v458 = vpop.f32.mrb[0].mxu0
      %v459 = vadd.f32 %v346, %v458
      %v460 = vpop.f32.mrb[0].mxu0
      %461 = vmatprep.mubr.bf16.mxu0 0
      %462 = vmatmul.mubr.bf16.gmra.mrb[0].mxu0 %v377
      %v463 = vpop.f32.mrb[0].mxu0
      %v464 = vadd.f32 %v346, %v463
      %v465 = vpop.f32.mrb[0].mxu0
      %v466 = vpop.f32.mrb[0].mxu0
      %v467 = vadd.f32 %v346, %v466
      %v468 = vpop.f32.mrb[0].mxu0
      %469 = vmatprep.mubr.bf16.mxu0 0
      %470 = vmatmul.mubr.bf16.gmra.mrb[0].mxu0 %v380
      %v471 = vpop.f32.mrb[0].mxu0
      %v472 = vadd.f32 %v346, %v471
      %v473 = vpop.f32.mrb[0].mxu0
      %v474 = vpop.f32.mrb[0].mxu0
      %v475 = vadd.f32 %v346, %v474
      %v476 = vpop.f32.mrb[0].mxu0
      %477 = vmatprep.mubr.bf16.mxu0 0
      %478 = vmatmul.mubr.bf16.gmra.mrb[0].mxu0 %v383
      %v479 = vpop.f32.mrb[0].mxu0
      %v480 = vadd.f32 %v346, %v479
      %v481 = vpop.f32.mrb[0].mxu0
      %v482 = vpop.f32.mrb[0].mxu0
      %v483 = vadd.f32 %v346, %v482
      %v484 = vpop.f32.mrb[0].mxu0
      %485 = vmatprep.mubr.bf16.mxu0 0
      %486 = vmatmul.mubr.bf16.gmra.mrb[0].mxu0 %v386
      %v487 = vpop.f32.mrb[0].mxu0
      %v488 = vadd.f32 %v346, %v487
      %v489 = vpop.f32.mrb[0].mxu0
      %v490 = vpop.f32.mrb[0].mxu0
      %v491 = vadd.f32 %v346, %v490
      %v492 = vpop.f32.mrb[0].mxu0
      %493 = vmatprep.mubr.bf16.mxu0 0
      %494 = vmatmul.mubr.bf16.gmra.mrb[0].mxu0 %v389
      %v495 = vpop.f32.mrb[0].mxu0
      %v496 = vadd.f32 %v346, %v495
      %v497 = vpop.f32.mrb[0].mxu0
      %v498 = vpop.f32.mrb[0].mxu0
      %v499 = vadd.f32 %v346, %v498
      %v500 = vpop.f32.mrb[0].mxu0
      %501 = vmatprep.mubr.bf16.mxu0 0
      %502 = vmatmul.mubr.bf16.gmra.mrb[0].mxu0 %v392
      %v503 = vpop.f32.mrb[0].mxu0
      %v504 = vadd.f32 %v346, %v503
      %v505 = vpop.f32.mrb[0].mxu0
      %v506 = vpop.f32.mrb[0].mxu0
      %v507 = vadd.f32 %v346, %v506
      %v508 = vpop.f32.mrb[0].mxu0
      %509 = vmatprep.mubr.bf16.mxu0 0
      %510 = vmatmul.mubr.bf16.gmra.mrb[0].mxu0 %v395
      %v511 = vpop.f32.mrb[0].mxu0
      %v512 = vadd.f32 %v346, %v511
      %v513 = vpop.f32.mrb[0].mxu0
      %v514 = vpop.f32.mrb[0].mxu0
      %v515 = vadd.f32 %v346, %v514
      %v516 = vpop.f32.mrb[0].mxu0
      %517 = vmatprep.mubr.bf16.mxu0 0
      %518 = vmatmul.mubr.bf16.gmra.mrb[0].mxu0 %v398
      %v519 = vpop.f32.mrb[0].mxu0
      %v520 = vadd.f32 %v346, %v519
      %v521 = vpop.f32.mrb[0].mxu0
      %v522 = vpop.f32.mrb[0].mxu0
      %v523 = vadd.f32 %v346, %v522
      %v524 = vpop.f32.mrb[0].mxu0
      %525 = vmatprep.mubr.bf16.mxu0 0
      %526 = vmatmul.mubr.bf16.gmra.mrb[0].mxu0 %v401
      %v527 = vpop.f32.mrb[0].mxu0
      %v528 = vadd.f32 %v346, %v527
      %v529 = vpop.f32.mrb[0].mxu0
      %v530 = vpop.f32.mrb[0].mxu0
      %v531 = vadd.f32 %v346, %v530
      %v532 = vpop.f32.mrb[0].mxu0
      %533 = vmatprep.mubr.bf16.mxu0 0
      %534 = vmatmul.mubr.bf16.gmra.mrb[0].mxu0 %v404
      %v535 = vpop.f32.mrb[0].mxu0
      %v536 = vadd.f32 %v346, %v535
      %v537 = vpop.f32.mrb[0].mxu0
      %v538 = vpop.f32.mrb[0].mxu0
      %v539 = vadd.f32 %v346, %v538
      %v540 = vpop.f32.mrb[0].mxu0
      %541 = vmatprep.mubr.bf16.mxu0 0
      %542 = vmatmul.mubr.bf16.gmra.mrb[0].mxu0 %v407
      %v543 = vpop.f32.mrb[0].mxu0
      %v544 = vadd.f32 %v346, %v543
      %v545 = vpop.f32.mrb[0].mxu0
      %v546 = vpop.f32.mrb[0].mxu0
      %v547 = vadd.f32 %v346, %v546
      %v548 = vpop.f32.mrb[0].mxu0
      %549 = vmatprep.mubr.bf16.mxu0 0
      %550 = vmatmul.mubr.bf16.gmra.mrb[0].mxu0 %v410
      %v551 = vpop.f32.mrb[0].mxu0
      %v552 = vadd.f32 %v346, %v551
      %v553 = vpop.f32.mrb[0].mxu0
      %v554 = vpop.f32.mrb[0].mxu0
      %v555 = vadd.f32 %v346, %v554
      %v556 = vpop.f32.mrb[0].mxu0
      %557 = vmatprep.mubr.bf16.mxu0 0
      %558 = vmatmul.mubr.bf16.gmra.mrb[0].mxu0 %v413
      %v559 = vpop.f32.mrb[0].mxu0
      %v560 = vadd.f32 %v346, %v559
      %v561 = vpop.f32.mrb[0].mxu0
      %v562 = vpop.f32.mrb[0].mxu0
      %v563 = vadd.f32 %v346, %v562
      %v564 = vpop.f32.mrb[0].mxu0
      %565 = vmatprep.mubr.bf16.mxu0 0
      %566 = vmatmul.mubr.bf16.gmra.mrb[0].mxu0 %v416
      %v567 = vpop.f32.mrb[0].mxu0
      %v568 = vadd.f32 %v346, %v567
      %v569 = vpop.f32.mrb[0].mxu0
      %v570 = vpop.f32.mrb[0].mxu0
      %v571 = vadd.f32 %v346, %v570
      %v572 = vpop.f32.mrb[0].mxu0
      %573 = vmatprep.mubr.bf16.mxu0 0
      %574 = vmatmul.mubr.bf16.gmra.mrb[0].mxu0 %v419
      %v575 = vpop.f32.mrb[0].mxu0
      %v576 = vadd.f32 %v346, %v575
      %v577 = vpop.f32.mrb[0].mxu0
      %v578 = vpop.f32.mrb[0].mxu0
      %v579 = vadd.f32 %v346, %v578
      %v580 = vpop.f32.mrb[0].mxu0
      %581 = vdwg.mxu0
      %v582 = vmax.f32 %v456, 0.0
      %v583 = vmax.f32 %v459, 0.0
      %v584 = vmax.f32 %v464, 0.0
      %v585 = vmax.f32 %v467, 0.0
      %v586 = vmax.f32 %v472, 0.0
      %v587 = vmax.f32 %v475, 0.0
      %v588 = vmax.f32 %v480, 0.0
      %v589 = vmax.f32 %v483, 0.0
      %v590 = vmax.f32 %v488, 0.0
      %v591 = vmax.f32 %v491, 0.0
      %v592 = vmax.f32 %v496, 0.0
      %v593 = vmax.f32 %v499, 0.0
      %v594 = vmax.f32 %v504, 0.0
      %v595 = vmax.f32 %v507, 0.0
      %v596 = vmax.f32 %v512, 0.0
      %v597 = vmax.f32 %v515, 0.0
      %v598 = vmax.f32 %v520, 0.0
      %v599 = vmax.f32 %v523, 0.0
      %v600 = vmax.f32 %v528, 0.0
      %v601 = vmax.f32 %v531, 0.0
      %v602 = vmax.f32 %v536, 0.0
      %v603 = vmax.f32 %v539, 0.0
      %v604 = vmax.f32 %v544, 0.0
      %v605 = vmax.f32 %v547, 0.0
      %v606 = vmax.f32 %v552, 0.0
      %v607 = vmax.f32 %v555, 0.0
      %v608 = vmax.f32 %v560, 0.0
      %v609 = vmax.f32 %v563, 0.0
      %v610 = vmax.f32 %v568, 0.0
      %v611 = vmax.f32 %v571, 0.0
      %v612 = vmax.f32 %v576, 0.0
      %v613 = vmax.f32 %v579, 0.0
      %v614 = vpack.c.bf16 %v583, %v582
      %v615 = vpack.c.bf16 %v585, %v584
      %v616 = vpack.c.bf16 %v587, %v586
      %v617 = vpack.c.bf16 %v589, %v588
      %v618 = vpack.c.bf16 %v591, %v590
      %v619 = vpack.c.bf16 %v593, %v592
      %v620 = vpack.c.bf16 %v595, %v594
      %v621 = vpack.c.bf16 %v597, %v596
      %v622 = vpack.c.bf16 %v599, %v598
      %v623 = vpack.c.bf16 %v601, %v600
      %v624 = vpack.c.bf16 %v603, %v602
      %v625 = vpack.c.bf16 %v605, %v604
      %v626 = vpack.c.bf16 %v607, %v606
      %v627 = vpack.c.bf16 %v609, %v608
      %v628 = vpack.c.bf16 %v611, %v610
      %v629 = vpack.c.bf16 %v613, %v612
      %v630 = vld [vmem:[%s3] sm:$0xf]
      %v631 = vld [vmem:[%s3 + $0x4] sm:$0xf]
      %v632 = vld [vmem:[%s3 + $0x8] sm:$0xf]
      %v633 = vld [vmem:[%s3 + $0xc] sm:$0xf]
      %v634 = vld [vmem:[%s3 + $0x10] sm:$0xf]
      %v635 = vld [vmem:[%s3 + $0x14] sm:$0xf]
      %v636 = vld [vmem:[%s3 + $0x18] sm:$0xf]
      %v637 = vld [vmem:[%s3 + $0x1c] sm:$0xf]
      %v638 = vld [vmem:[%s3 + $0x20] sm:$0xf]
      %v639 = vld [vmem:[%s3 + $0x24] sm:$0xf]
      %v640 = vld [vmem:[%s3 + $0x28] sm:$0xf]
      %v641 = vld [vmem:[%s3 + $0x2c] sm:$0xf]
      %v642 = vld [vmem:[%s3 + $0x30] sm:$0xf]
      %v643 = vld [vmem:[%s3 + $0x34] sm:$0xf]
      %v644 = vld [vmem:[%s3 + $0x38] sm:$0xf]
      %v645 = vld [vmem:[%s3 + $0x3c] sm:$0xf]
      %v646 = vld [vmem:[%s4] sm:$0x1]
      %v648 = vlaneseq
      %v649 = vshrl.u32 %v648, 7
      %v650 = vsub.s32 0, %v649
      %v651 = vrot.slane %v646, %v650
      %v669 = vunpack.c.l.b16 %v630
      %v670 = vunpack.c.l.b16 %v631
      %v671 = vunpack.c.l.b16 %v632
      %v672 = vunpack.c.l.b16 %v633
      %v673 = vunpack.c.l.b16 %v634
      %v674 = vunpack.c.l.b16 %v635
      %v675 = vunpack.c.l.b16 %v636
      %v676 = vunpack.c.l.b16 %v637
      %v677 = vunpack.c.l.b16 %v638
      %v678 = vunpack.c.l.b16 %v639
      %v679 = vunpack.c.l.b16 %v640
      %v680 = vunpack.c.l.b16 %v641
      %v681 = vunpack.c.l.b16 %v642
      %v682 = vunpack.c.l.b16 %v643
      %v683 = vunpack.c.l.b16 %v644
      %v684 = vunpack.c.l.b16 %v645
      %v685 = vpack.c.b16 %v670, %v669
      %v686 = vpack.c.b16 %v672, %v671
      %v687 = vpack.c.b16 %v674, %v673
      %v688 = vpack.c.b16 %v676, %v675
      %v689 = vpack.c.b16 %v678, %v677
      %v690 = vpack.c.b16 %v680, %v679
      %v691 = vpack.c.b16 %v682, %v681
      %v692 = vpack.c.b16 %v684, %v683
      %701 = vmatprep.subr.bf16.mxu0 0
      %702 = vmatpush1.bf16.msra.mxu0 %v685
      %703 = vmatprep.subr.bf16.mxu0 0
      %704 = vmatpush1.bf16.msra.mxu0 %v686
      %705 = vmatprep.subr.bf16.mxu0 0
      %706 = vmatpush1.bf16.msra.mxu0 %v687
      %707 = vmatprep.subr.bf16.mxu0 0
      %708 = vmatpush1.bf16.msra.mxu0 %v688
      %709 = vmatprep.subr.bf16.mxu0 0
      %710 = vmatpush1.bf16.msra.mxu0 %v689
      %711 = vmatprep.subr.bf16.mxu0 0
      %712 = vmatpush1.bf16.msra.mxu0 %v690
      %713 = vmatprep.subr.bf16.mxu0 0
      %714 = vmatpush1.bf16.msra.mxu0 %v691
      %715 = vmatprep.subr.bf16.mxu0 0
      %716 = vmatpush1.bf16.msra.mxu0 %v692
      %717 = vmatprep.subr.bf16.mxu0 0
      %718 = vmatpush1.bf16.msra.mxu0 0
      %719 = vmatprep.subr.bf16.mxu0 0
      %720 = vmatpush1.bf16.msra.mxu0 0
      %721 = vmatprep.subr.bf16.mxu0 0
      %722 = vmatpush1.bf16.msra.mxu0 0
      %723 = vmatprep.subr.bf16.mxu0 0
      %724 = vmatpush1.bf16.msra.mxu0 0
      %725 = vmatprep.subr.bf16.mxu0 0
      %726 = vmatpush1.bf16.msra.mxu0 0
      %727 = vmatprep.subr.bf16.mxu0 0
      %728 = vmatpush1.bf16.msra.mxu0 0
      %729 = vmatprep.subr.bf16.mxu0 0
      %730 = vmatpush1.bf16.msra.mxu0 0
      %731 = vmatprep.subr.bf16.mxu0 0
      %732 = vmatpush1.bf16.msra.mxu0 0
      %733 = vmatprep.mubr.bf16.mxu0 0
      %734 = vmatmul.mubr.bf16.gmra.mrb[0].mxu0 %v614
      %v735 = vpop.f32.mrb[0].mxu0
      %v736 = vadd.f32 %v651, %v735
      %v737 = vpop.f32.mrb[0].mxu0
      %v738 = vpop.f32.mrb[0].mxu0
      %v739 = vadd.f32 %v651, %v738
      %v740 = vpop.f32.mrb[0].mxu0
      %741 = vmatprep.mubr.bf16.mxu0 0
      %742 = vmatmul.mubr.bf16.gmra.mrb[0].mxu0 %v615
      %v743 = vpop.f32.mrb[0].mxu0
      %v744 = vadd.f32 %v651, %v743
      %v745 = vpop.f32.mrb[0].mxu0
      %v746 = vpop.f32.mrb[0].mxu0
      %v747 = vadd.f32 %v651, %v746
      %v748 = vpop.f32.mrb[0].mxu0
      %749 = vmatprep.mubr.bf16.mxu0 0
      %750 = vmatmul.mubr.bf16.gmra.mrb[0].mxu0 %v616
      %v751 = vpop.f32.mrb[0].mxu0
      %v752 = vadd.f32 %v651, %v751
      %v753 = vpop.f32.mrb[0].mxu0
      %v754 = vpop.f32.mrb[0].mxu0
      %v755 = vadd.f32 %v651, %v754
      %v756 = vpop.f32.mrb[0].mxu0
      %757 = vmatprep.mubr.bf16.mxu0 0
      %758 = vmatmul.mubr.bf16.gmra.mrb[0].mxu0 %v617
      %v759 = vpop.f32.mrb[0].mxu0
      %v760 = vadd.f32 %v651, %v759
      %v761 = vpop.f32.mrb[0].mxu0
      %v762 = vpop.f32.mrb[0].mxu0
      %v763 = vadd.f32 %v651, %v762
      %v764 = vpop.f32.mrb[0].mxu0
      %765 = vmatprep.mubr.bf16.mxu0 0
      %766 = vmatmul.mubr.bf16.gmra.mrb[0].mxu0 %v618
      %v767 = vpop.f32.mrb[0].mxu0
      %v768 = vadd.f32 %v651, %v767
      %v769 = vpop.f32.mrb[0].mxu0
      %v770 = vpop.f32.mrb[0].mxu0
      %v771 = vadd.f32 %v651, %v770
      %v772 = vpop.f32.mrb[0].mxu0
      %773 = vmatprep.mubr.bf16.mxu0 0
      %774 = vmatmul.mubr.bf16.gmra.mrb[0].mxu0 %v619
      %v775 = vpop.f32.mrb[0].mxu0
      %v776 = vadd.f32 %v651, %v775
      %v777 = vpop.f32.mrb[0].mxu0
      %v778 = vpop.f32.mrb[0].mxu0
      %v779 = vadd.f32 %v651, %v778
      %v780 = vpop.f32.mrb[0].mxu0
      %781 = vmatprep.mubr.bf16.mxu0 0
      %782 = vmatmul.mubr.bf16.gmra.mrb[0].mxu0 %v620
      %v783 = vpop.f32.mrb[0].mxu0
      %v784 = vadd.f32 %v651, %v783
      %v785 = vpop.f32.mrb[0].mxu0
      %v786 = vpop.f32.mrb[0].mxu0
      %v787 = vadd.f32 %v651, %v786
      %v788 = vpop.f32.mrb[0].mxu0
      %789 = vmatprep.mubr.bf16.mxu0 0
      %790 = vmatmul.mubr.bf16.gmra.mrb[0].mxu0 %v621
      %v791 = vpop.f32.mrb[0].mxu0
      %v792 = vadd.f32 %v651, %v791
      %v793 = vpop.f32.mrb[0].mxu0
      %v794 = vpop.f32.mrb[0].mxu0
      %v795 = vadd.f32 %v651, %v794
      %v796 = vpop.f32.mrb[0].mxu0
      %797 = vmatprep.mubr.bf16.mxu0 0
      %798 = vmatmul.mubr.bf16.gmra.mrb[0].mxu0 %v622
      %v799 = vpop.f32.mrb[0].mxu0
      %v800 = vadd.f32 %v651, %v799
      %v801 = vpop.f32.mrb[0].mxu0
      %v802 = vpop.f32.mrb[0].mxu0
      %v803 = vadd.f32 %v651, %v802
      %v804 = vpop.f32.mrb[0].mxu0
      %805 = vmatprep.mubr.bf16.mxu0 0
      %806 = vmatmul.mubr.bf16.gmra.mrb[0].mxu0 %v623
      %v807 = vpop.f32.mrb[0].mxu0
      %v808 = vadd.f32 %v651, %v807
      %v809 = vpop.f32.mrb[0].mxu0
      %v810 = vpop.f32.mrb[0].mxu0
      %v811 = vadd.f32 %v651, %v810
      %v812 = vpop.f32.mrb[0].mxu0
      %813 = vmatprep.mubr.bf16.mxu0 0
      %814 = vmatmul.mubr.bf16.gmra.mrb[0].mxu0 %v624
      %v815 = vpop.f32.mrb[0].mxu0
      %v816 = vadd.f32 %v651, %v815
      %v817 = vpop.f32.mrb[0].mxu0
      %v818 = vpop.f32.mrb[0].mxu0
      %v819 = vadd.f32 %v651, %v818
      %v820 = vpop.f32.mrb[0].mxu0
      %821 = vmatprep.mubr.bf16.mxu0 0
      %822 = vmatmul.mubr.bf16.gmra.mrb[0].mxu0 %v625
      %v823 = vpop.f32.mrb[0].mxu0
      %v824 = vadd.f32 %v651, %v823
      %v825 = vpop.f32.mrb[0].mxu0
      %v826 = vpop.f32.mrb[0].mxu0
      %v827 = vadd.f32 %v651, %v826
      %v828 = vpop.f32.mrb[0].mxu0
      %829 = vmatprep.mubr.bf16.mxu0 0
      %830 = vmatmul.mubr.bf16.gmra.mrb[0].mxu0 %v626
      %v831 = vpop.f32.mrb[0].mxu0
      %v832 = vadd.f32 %v651, %v831
      %v833 = vpop.f32.mrb[0].mxu0
      %v834 = vpop.f32.mrb[0].mxu0
      %v835 = vadd.f32 %v651, %v834
      %v836 = vpop.f32.mrb[0].mxu0
      %837 = vmatprep.mubr.bf16.mxu0 0
      %838 = vmatmul.mubr.bf16.gmra.mrb[0].mxu0 %v627
      %v839 = vpop.f32.mrb[0].mxu0
      %v840 = vadd.f32 %v651, %v839
      %v841 = vpop.f32.mrb[0].mxu0
      %v842 = vpop.f32.mrb[0].mxu0
      %v843 = vadd.f32 %v651, %v842
      %v844 = vpop.f32.mrb[0].mxu0
      %845 = vmatprep.mubr.bf16.mxu0 0
      %846 = vmatmul.mubr.bf16.gmra.mrb[0].mxu0 %v628
      %v847 = vpop.f32.mrb[0].mxu0
      %v848 = vadd.f32 %v651, %v847
      %v849 = vpop.f32.mrb[0].mxu0
      %v850 = vpop.f32.mrb[0].mxu0
      %v851 = vadd.f32 %v651, %v850
      %v852 = vpop.f32.mrb[0].mxu0
      %853 = vmatprep.mubr.bf16.mxu0 0
      %854 = vmatmul.mubr.bf16.gmra.mrb[0].mxu0 %v629
      %v855 = vpop.f32.mrb[0].mxu0
      %v856 = vadd.f32 %v651, %v855
      %v857 = vpop.f32.mrb[0].mxu0
      %v858 = vpop.f32.mrb[0].mxu0
      %v859 = vadd.f32 %v651, %v858
      %v860 = vpop.f32.mrb[0].mxu0
      %861 = vdwg.mxu0
      %v862 = vmax.f32 %v736, 0.0
      %v863 = vmax.f32 %v739, 0.0
      %v864 = vmax.f32 %v744, 0.0
      %v865 = vmax.f32 %v747, 0.0
      %v866 = vmax.f32 %v752, 0.0
      %v867 = vmax.f32 %v755, 0.0
      %v868 = vmax.f32 %v760, 0.0
      %v869 = vmax.f32 %v763, 0.0
      %v870 = vmax.f32 %v768, 0.0
      %v871 = vmax.f32 %v771, 0.0
      %v872 = vmax.f32 %v776, 0.0
      %v873 = vmax.f32 %v779, 0.0
      %v874 = vmax.f32 %v784, 0.0
      %v875 = vmax.f32 %v787, 0.0
      %v876 = vmax.f32 %v792, 0.0
      %v877 = vmax.f32 %v795, 0.0
      %v878 = vmax.f32 %v800, 0.0
      %v879 = vmax.f32 %v803, 0.0
      %v880 = vmax.f32 %v808, 0.0
      %v881 = vmax.f32 %v811, 0.0
      %v882 = vmax.f32 %v816, 0.0
      %v883 = vmax.f32 %v819, 0.0
      %v884 = vmax.f32 %v824, 0.0
      %v885 = vmax.f32 %v827, 0.0
      %v886 = vmax.f32 %v832, 0.0
      %v887 = vmax.f32 %v835, 0.0
      %v888 = vmax.f32 %v840, 0.0
      %v889 = vmax.f32 %v843, 0.0
      %v890 = vmax.f32 %v848, 0.0
      %v891 = vmax.f32 %v851, 0.0
      %v892 = vmax.f32 %v856, 0.0
      %v893 = vmax.f32 %v859, 0.0
      %v894 = vpack.c.bf16 %v863, %v862
      %v895 = vpack.c.bf16 %v865, %v864
      %v896 = vpack.c.bf16 %v867, %v866
      %v897 = vpack.c.bf16 %v869, %v868
      %v898 = vpack.c.bf16 %v871, %v870
      %v899 = vpack.c.bf16 %v873, %v872
      %v900 = vpack.c.bf16 %v875, %v874
      %v901 = vpack.c.bf16 %v877, %v876
      %v902 = vpack.c.bf16 %v879, %v878
      %v903 = vpack.c.bf16 %v881, %v880
      %v904 = vpack.c.bf16 %v883, %v882
      %v905 = vpack.c.bf16 %v885, %v884
      %v906 = vpack.c.bf16 %v887, %v886
      %v907 = vpack.c.bf16 %v889, %v888
      %v908 = vpack.c.bf16 %v891, %v890
      %v909 = vpack.c.bf16 %v893, %v892
      %v910 = vld [vmem:[%s5] sm:$0xf]
      %v911 = vld [vmem:[%s5 + $0x4] sm:$0xf]
      %v912 = vld [vmem:[%s5 + $0x8] sm:$0xf]
      %v913 = vld [vmem:[%s5 + $0xc] sm:$0xf]
      %v914 = vld [vmem:[%s5 + $0x10] sm:$0xf]
      %v915 = vld [vmem:[%s5 + $0x14] sm:$0xf]
      %v916 = vld [vmem:[%s5 + $0x18] sm:$0xf]
      %v917 = vld [vmem:[%s5 + $0x1c] sm:$0xf]
      %v918 = vld [vmem:[%s5 + $0x20] sm:$0xf]
      %v919 = vld [vmem:[%s5 + $0x24] sm:$0xf]
      %v920 = vld [vmem:[%s5 + $0x28] sm:$0xf]
      %v921 = vld [vmem:[%s5 + $0x2c] sm:$0xf]
      %v922 = vld [vmem:[%s5 + $0x30] sm:$0xf]
      %v923 = vld [vmem:[%s5 + $0x34] sm:$0xf]
      %v924 = vld [vmem:[%s5 + $0x38] sm:$0xf]
      %v925 = vld [vmem:[%s5 + $0x3c] sm:$0xf]
      %v926 = vld [vmem:[#allocation2] sm:$0x1]
      %v928 = vlaneseq
      %v929 = vshrl.u32 %v928, 7
      %v930 = vsub.s32 0, %v929
      %v931 = vrot.slane %v926, %v930
      %v949 = vunpack.c.l.b16 %v910
      %v950 = vunpack.c.l.b16 %v911
      %v951 = vunpack.c.l.b16 %v912
      %v952 = vunpack.c.l.b16 %v913
      %v953 = vunpack.c.l.b16 %v914
      %v954 = vunpack.c.l.b16 %v915
      %v955 = vunpack.c.l.b16 %v916
      %v956 = vunpack.c.l.b16 %v917
      %v957 = vunpack.c.l.b16 %v918
      %v958 = vunpack.c.l.b16 %v919
      %v959 = vunpack.c.l.b16 %v920
      %v960 = vunpack.c.l.b16 %v921
      %v961 = vunpack.c.l.b16 %v922
      %v962 = vunpack.c.l.b16 %v923
      %v963 = vunpack.c.l.b16 %v924
      %v964 = vunpack.c.l.b16 %v925
      %v965 = vpack.c.b16 %v950, %v949
      %v966 = vpack.c.b16 %v952, %v951
      %v967 = vpack.c.b16 %v954, %v953
      %v968 = vpack.c.b16 %v956, %v955
      %v969 = vpack.c.b16 %v958, %v957
      %v970 = vpack.c.b16 %v960, %v959
      %v971 = vpack.c.b16 %v962, %v961
      %v972 = vpack.c.b16 %v964, %v963
      %981 = vmatprep.subr.bf16.mxu0 0
      %982 = vmatpush1.bf16.msra.mxu0 %v965
      %983 = vmatprep.subr.bf16.mxu0 0
      %984 = vmatpush1.bf16.msra.mxu0 %v966
      %985 = vmatprep.subr.bf16.mxu0 0
      %986 = vmatpush1.bf16.msra.mxu0 %v967
      %987 = vmatprep.subr.bf16.mxu0 0
      %988 = vmatpush1.bf16.msra.mxu0 %v968
      %989 = vmatprep.subr.bf16.mxu0 0
      %990 = vmatpush1.bf16.msra.mxu0 %v969
      %991 = vmatprep.subr.bf16.mxu0 0
      %992 = vmatpush1.bf16.msra.mxu0 %v970
      %993 = vmatprep.subr.bf16.mxu0 0
      %994 = vmatpush1.bf16.msra.mxu0 %v971
      %995 = vmatprep.subr.bf16.mxu0 0
      %996 = vmatpush1.bf16.msra.mxu0 %v972
      %997 = vmatprep.subr.bf16.mxu0 0
      %998 = vmatpush1.bf16.msra.mxu0 0
      %999 = vmatprep.subr.bf16.mxu0 0
      %1000 = vmatpush1.bf16.msra.mxu0 0
      %1001 = vmatprep.subr.bf16.mxu0 0
      %1002 = vmatpush1.bf16.msra.mxu0 0
      %1003 = vmatprep.subr.bf16.mxu0 0
      %1004 = vmatpush1.bf16.msra.mxu0 0
      %1005 = vmatprep.subr.bf16.mxu0 0
      %1006 = vmatpush1.bf16.msra.mxu0 0
      %1007 = vmatprep.subr.bf16.mxu0 0
      %1008 = vmatpush1.bf16.msra.mxu0 0
      %1009 = vmatprep.subr.bf16.mxu0 0
      %1010 = vmatpush1.bf16.msra.mxu0 0
      %1011 = vmatprep.subr.bf16.mxu0 0
      %1012 = vmatpush1.bf16.msra.mxu0 0
      %1013 = vmatprep.mubr.bf16.mxu0 0
      %1014 = vmatmul.mubr.bf16.gmra.mrb[0].mxu0 %v894
      %v1015 = vpop.f32.mrb[0].mxu0
      %v1016 = vadd.f32 %v931, %v1015
      %v1017 = vpop.f32.mrb[0].mxu0
      %v1018 = vpop.f32.mrb[0].mxu0
      %v1019 = vadd.f32 %v931, %v1018
      %v1020 = vpop.f32.mrb[0].mxu0
      %1021 = vmatprep.mubr.bf16.mxu0 0
      %1022 = vmatmul.mubr.bf16.gmra.mrb[0].mxu0 %v895
      %v1023 = vpop.f32.mrb[0].mxu0
      %v1024 = vadd.f32 %v931, %v1023
      %v1025 = vpop.f32.mrb[0].mxu0
      %v1026 = vpop.f32.mrb[0].mxu0
      %v1027 = vadd.f32 %v931, %v1026
      %v1028 = vpop.f32.mrb[0].mxu0
      %1029 = vmatprep.mubr.bf16.mxu0 0
      %1030 = vmatmul.mubr.bf16.gmra.mrb[0].mxu0 %v896
      %v1031 = vpop.f32.mrb[0].mxu0
      %v1032 = vadd.f32 %v931, %v1031
      %v1033 = vpop.f32.mrb[0].mxu0
      %v1034 = vpop.f32.mrb[0].mxu0
      %v1035 = vadd.f32 %v931, %v1034
      %v1036 = vpop.f32.mrb[0].mxu0
      %1037 = vmatprep.mubr.bf16.mxu0 0
      %1038 = vmatmul.mubr.bf16.gmra.mrb[0].mxu0 %v897
      %v1039 = vpop.f32.mrb[0].mxu0
      %v1040 = vadd.f32 %v931, %v1039
      %v1041 = vpop.f32.mrb[0].mxu0
      %v1042 = vpop.f32.mrb[0].mxu0
      %v1043 = vadd.f32 %v931, %v1042
      %v1044 = vpop.f32.mrb[0].mxu0
      %1045 = vmatprep.mubr.bf16.mxu0 0
      %1046 = vmatmul.mubr.bf16.gmra.mrb[0].mxu0 %v898
      %v1047 = vpop.f32.mrb[0].mxu0
      %v1048 = vadd.f32 %v931, %v1047
      %v1049 = vpop.f32.mrb[0].mxu0
      %v1050 = vpop.f32.mrb[0].mxu0
      %v1051 = vadd.f32 %v931, %v1050
      %v1052 = vpop.f32.mrb[0].mxu0
      %1053 = vmatprep.mubr.bf16.mxu0 0
      %1054 = vmatmul.mubr.bf16.gmra.mrb[0].mxu0 %v899
      %v1055 = vpop.f32.mrb[0].mxu0
      %v1056 = vadd.f32 %v931, %v1055
      %v1057 = vpop.f32.mrb[0].mxu0
      %v1058 = vpop.f32.mrb[0].mxu0
      %v1059 = vadd.f32 %v931, %v1058
      %v1060 = vpop.f32.mrb[0].mxu0
      %1061 = vmatprep.mubr.bf16.mxu0 0
      %1062 = vmatmul.mubr.bf16.gmra.mrb[0].mxu0 %v900
      %v1063 = vpop.f32.mrb[0].mxu0
      %v1064 = vadd.f32 %v931, %v1063
      %v1065 = vpop.f32.mrb[0].mxu0
      %v1066 = vpop.f32.mrb[0].mxu0
      %v1067 = vadd.f32 %v931, %v1066
      %v1068 = vpop.f32.mrb[0].mxu0
      %1069 = vmatprep.mubr.bf16.mxu0 0
      %1070 = vmatmul.mubr.bf16.gmra.mrb[0].mxu0 %v901
      %v1071 = vpop.f32.mrb[0].mxu0
      %v1072 = vadd.f32 %v931, %v1071
      %v1073 = vpop.f32.mrb[0].mxu0
      %v1074 = vpop.f32.mrb[0].mxu0
      %v1075 = vadd.f32 %v931, %v1074
      %v1076 = vpop.f32.mrb[0].mxu0
      %1077 = vmatprep.mubr.bf16.mxu0 0
      %1078 = vmatmul.mubr.bf16.gmra.mrb[0].mxu0 %v902
      %v1079 = vpop.f32.mrb[0].mxu0
      %v1080 = vadd.f32 %v931, %v1079
      %v1081 = vpop.f32.mrb[0].mxu0
      %v1082 = vpop.f32.mrb[0].mxu0
      %v1083 = vadd.f32 %v931, %v1082
      %v1084 = vpop.f32.mrb[0].mxu0
      %1085 = vmatprep.mubr.bf16.mxu0 0
      %1086 = vmatmul.mubr.bf16.gmra.mrb[0].mxu0 %v903
      %v1087 = vpop.f32.mrb[0].mxu0
      %v1088 = vadd.f32 %v931, %v1087
      %v1089 = vpop.f32.mrb[0].mxu0
      %v1090 = vpop.f32.mrb[0].mxu0
      %v1091 = vadd.f32 %v931, %v1090
      %v1092 = vpop.f32.mrb[0].mxu0
      %1093 = vmatprep.mubr.bf16.mxu0 0
      %1094 = vmatmul.mubr.bf16.gmra.mrb[0].mxu0 %v904
      %v1095 = vpop.f32.mrb[0].mxu0
      %v1096 = vadd.f32 %v931, %v1095
      %v1097 = vpop.f32.mrb[0].mxu0
      %v1098 = vpop.f32.mrb[0].mxu0
      %v1099 = vadd.f32 %v931, %v1098
      %v1100 = vpop.f32.mrb[0].mxu0
      %1101 = vmatprep.mubr.bf16.mxu0 0
      %1102 = vmatmul.mubr.bf16.gmra.mrb[0].mxu0 %v905
      %v1103 = vpop.f32.mrb[0].mxu0
      %v1104 = vadd.f32 %v931, %v1103
      %v1105 = vpop.f32.mrb[0].mxu0
      %v1106 = vpop.f32.mrb[0].mxu0
      %v1107 = vadd.f32 %v931, %v1106
      %v1108 = vpop.f32.mrb[0].mxu0
      %1109 = vmatprep.mubr.bf16.mxu0 0
      %1110 = vmatmul.mubr.bf16.gmra.mrb[0].mxu0 %v906
      %v1111 = vpop.f32.mrb[0].mxu0
      %v1112 = vadd.f32 %v931, %v1111
      %v1113 = vpop.f32.mrb[0].mxu0
      %v1114 = vpop.f32.mrb[0].mxu0
      %v1115 = vadd.f32 %v931, %v1114
      %v1116 = vpop.f32.mrb[0].mxu0
      %1117 = vmatprep.mubr.bf16.mxu0 0
      %1118 = vmatmul.mubr.bf16.gmra.mrb[0].mxu0 %v907
      %v1119 = vpop.f32.mrb[0].mxu0
      %v1120 = vadd.f32 %v931, %v1119
      %v1121 = vpop.f32.mrb[0].mxu0
      %v1122 = vpop.f32.mrb[0].mxu0
      %v1123 = vadd.f32 %v931, %v1122
      %v1124 = vpop.f32.mrb[0].mxu0
      %1125 = vmatprep.mubr.bf16.mxu0 0
      %1126 = vmatmul.mubr.bf16.gmra.mrb[0].mxu0 %v908
      %v1127 = vpop.f32.mrb[0].mxu0
      %v1128 = vadd.f32 %v931, %v1127
      %v1129 = vpop.f32.mrb[0].mxu0
      %v1130 = vpop.f32.mrb[0].mxu0
      %v1131 = vadd.f32 %v931, %v1130
      %v1132 = vpop.f32.mrb[0].mxu0
      %1133 = vmatprep.mubr.bf16.mxu0 0
      %1134 = vmatmul.mubr.bf16.gmra.mrb[0].mxu0 %v909
      %v1135 = vpop.f32.mrb[0].mxu0
      %v1136 = vadd.f32 %v931, %v1135
      %v1137 = vpop.f32.mrb[0].mxu0
      %v1138 = vpop.f32.mrb[0].mxu0
      %v1139 = vadd.f32 %v931, %v1138
      %v1140 = vpop.f32.mrb[0].mxu0
      %1141 = vdwg.mxu0
      %vm1142 = vcmask 7168
      %1143 = vst.msk [vmem:[%s282] sm:$0xff] %vm1142, %v1016
      %1144 = vst.msk [vmem:[%s282 + $0x8] sm:$0xff] %vm1142, %v1019
      %1145 = vst.msk [vmem:[%s282 + $0x10] sm:$0xff] %vm1142, %v1024
      %1146 = vst.msk [vmem:[%s282 + $0x18] sm:$0xff] %vm1142, %v1027
      %1147 = vst.msk [vmem:[%s282 + $0x20] sm:$0xff] %vm1142, %v1032
      %1148 = vst.msk [vmem:[%s282 + $0x28] sm:$0xff] %vm1142, %v1035
      %1149 = vst.msk [vmem:[%s282 + $0x30] sm:$0xff] %vm1142, %v1040
      %1150 = vst.msk [vmem:[%s282 + $0x38] sm:$0xff] %vm1142, %v1043
      %1151 = vst.msk [vmem:[%s282 + $0x40] sm:$0xff] %vm1142, %v1048
      %1152 = vst.msk [vmem:[%s282 + $0x48] sm:$0xff] %vm1142, %v1051
      %1153 = vst.msk [vmem:[%s282 + $0x50] sm:$0xff] %vm1142, %v1056
      %1154 = vst.msk [vmem:[%s282 + $0x58] sm:$0xff] %vm1142, %v1059
      %1155 = vst.msk [vmem:[%s282 + $0x60] sm:$0xff] %vm1142, %v1064
      %1156 = vst.msk [vmem:[%s282 + $0x68] sm:$0xff] %vm1142, %v1067
      %1157 = vst.msk [vmem:[%s282 + $0x70] sm:$0xff] %vm1142, %v1072
      %1158 = vst.msk [vmem:[%s282 + $0x78] sm:$0xff] %vm1142, %v1075
      %1159 = vst.msk [vmem:[%s282 + $0x80] sm:$0xff] %vm1142, %v1080
      %1160 = vst.msk [vmem:[%s282 + $0x88] sm:$0xff] %vm1142, %v1083
      %1161 = vst.msk [vmem:[%s282 + $0x90] sm:$0xff] %vm1142, %v1088
      %1162 = vst.msk [vmem:[%s282 + $0x98] sm:$0xff] %vm1142, %v1091
      %1163 = vst.msk [vmem:[%s282 + $0xa0] sm:$0xff] %vm1142, %v1096
      %1164 = vst.msk [vmem:[%s282 + $0xa8] sm:$0xff] %vm1142, %v1099
      %1165 = vst.msk [vmem:[%s282 + $0xb0] sm:$0xff] %vm1142, %v1104
      %1166 = vst.msk [vmem:[%s282 + $0xb8] sm:$0xff] %vm1142, %v1107
      %1167 = vst.msk [vmem:[%s282 + $0xc0] sm:$0xff] %vm1142, %v1112
      %1168 = vst.msk [vmem:[%s282 + $0xc8] sm:$0xff] %vm1142, %v1115
      %1169 = vst.msk [vmem:[%s282 + $0xd0] sm:$0xff] %vm1142, %v1120
      %1170 = vst.msk [vmem:[%s282 + $0xd8] sm:$0xff] %vm1142, %v1123
      %1171 = vst.msk [vmem:[%s282 + $0xe0] sm:$0xff] %vm1142, %v1128
      %1172 = vst.msk [vmem:[%s282 + $0xe8] sm:$0xff] %vm1142, %v1131
      %1173 = vst.msk [vmem:[%s282 + $0xf0] sm:$0xff] %vm1142, %v1136
      %1174 = vst.msk [vmem:[%s282 + $0xf8] sm:$0xff] %vm1142, %v1139
      %s1175 = smul.u32 32, %s20
      %p1176 = scmp.lt.s32.totalorder %s1175, 63
      %s1177 = scalar_select %p1176, %s1175, 63
      %s1178 = smul.addr %s1177, 8
      %s1179 = scalar_lea.vmem %s7, %s1178
      // Predicated region
      $region49: #{tpu_custom_call.1} parent=47 // pred_check
        %p1180 = pneg %p190
      $region50: #{tpu_custom_call.1} parent=47 // pred_check_branch
        %1182 = sbr.rel (%p1180) target = $region52
      $region51: #{tpu_custom_call.1} parent=47 // pred_region
        %s1183 = smul.u32 32, %s20
      $region52: #{tpu_custom_call.1} parent=47 // pred_fallthru
        _
    $region48: #{tpu_custom_call.1} parent=5 // pred_fallthru
      _
    %p1184 = scmp.le.s32.totalorder 2, %s15
    // Predicated region
    $region53: #{tpu_custom_call.1} parent=5 // pred_check
      %p1185 = pneg %p1184
    $region54: #{tpu_custom_call.1} parent=5 // pred_check_branch
      %1187 = sbr.rel (%p1185) target = $region56
    $region55: #{tpu_custom_call.1} parent=5 // pred_region
      %s1188 = ssub.s32 %s15, 2
      // Predicated region
      $region57: #{tpu_custom_call.1} parent=55 // pred_check
        %p1189 = pneg %p196
      $region58: #{tpu_custom_call.1} parent=55 // pred_check_branch
        %1191 = sbr.rel (%p1189) target = $region60
      $region59: #{tpu_custom_call.1} parent=55 // pred_region
        %s1192 = smul.u32 32, %s21
        %p1193 = scmp.lt.s32.totalorder %s1192, 63
        %s1194 = scalar_select %p1193, %s1192, 63
        %s1195 = smul.addr %s1194, 8
        %s1196 = scalar_lea.vmem %s7, %s1195
      $region60: #{tpu_custom_call.1} parent=55 // pred_fallthru
        _
    $region56: #{tpu_custom_call.1} parent=5 // pred_fallthru
      _
  $region6: #{tpu_custom_call.1} parent=0 // loop_footer
    %s19 = sadd.s32 1, %s15
  $region7: #{tpu_custom_call.1} parent=0 // loop_footer_branch
    %14 = sbr.rel target = $region3
  $region8: #{tpu_custom_call.1} parent=0 // loop_exit
    _

</llo_original>
